<compile_context>
chip_gen: v5e
topology: v5e:2x2
jax: 0.10.0
libtpu: 0.0.40
codegen_flags: <defaults>
</compile_context>

<pallas_src>
import functools

import jax
import jax.numpy as jnp
from jax.experimental import pallas as pl
from jax.experimental.pallas import tpu as pltpu

_SUB = 16  # bf16 sublane pack


def _round_up(x, m):
    return ((x + m - 1) // m) * m


def _fusion_kernel(hl_ref, hp_ref, mask_ref, w_ref, b_ref, vh_ref, vp_ref, *,
                   inv_len):
    bn, F = hl_ref.shape                 # headline: Lh squeezed -> 2D
    _, Lp, _ = hp_ref.shape
    Dp = w_ref.shape[1]                  # hidden dim padded to a 128 multiple

    w = w_ref[...]                       # [F, Dp]  bf16
    b = b_ref[...]                       # [1, Dp]  f32
    valid = mask_ref[...] > 0.0          # [bn, Lp, 1] bool

    # ---- headline projection: small (bn, F) x (F, Dp) dot ----
    h_head = jnp.maximum(
        jnp.dot(hl_ref[...], w, preferred_element_type=jnp.float32) + b, 0.0)  # [bn, Dp]

    # ---- para projection: one big MXU matmul over bn*Lp rows ----
    # (bn, Lp, F) -> (bn*Lp, F) is a free relayout because Lp % 16 == 0 (bf16).
    hp2 = hp_ref[...].reshape(bn * Lp, F)
    h_para = jnp.maximum(
        jnp.dot(hp2, w, preferred_element_type=jnp.float32) + b, 0.0
    ).reshape(bn, Lp, Dp)                                                       # [bn, Lp, Dp]

    # ---- global mean: headline always counted, masked para zeroed, / (1+Lp_orig) ----
    sum_para = jnp.where(valid, h_para, 0.0).sum(axis=1)                        # [bn, Dp]
    mean = (h_head + sum_para) * jnp.float32(inv_len)

    # ---- global max: masked para positions -> -inf (headline >= 0 always wins) ----
    max_para = jnp.where(valid, h_para, -jnp.inf).max(axis=1)                   # [bn, Dp]
    gmax = jnp.maximum(h_head, max_para)

    # ---- lane-aligned slice-stores (each chunk starts on a 128-lane boundary) ----
    vh_ref[:, 0:Dp] = h_head
    vh_ref[:, Dp:2 * Dp] = mean
    vh_ref[:, 2 * Dp:3 * Dp] = gmax

    vp_ref[:, :, 0:Dp] = h_para
    vp_ref[:, :, Dp:2 * Dp] = jnp.broadcast_to(mean.reshape(bn, 1, Dp), (bn, Lp, Dp))
    vp_ref[:, :, 2 * Dp:3 * Dp] = jnp.broadcast_to(gmax.reshape(bn, 1, Dp), (bn, Lp, Dp))


def global_local_fusion_forward(h_headline, h_para, para_mask, params):
    """h_headline: [N, 1, F], h_para: [N, Lp, F], para_mask: [N, Lp] bool.

    Returns (v_headline [N, 1, 3D], v_para [N, Lp, 3D]) in float32."""
    N, Lh, F = h_headline.shape
    assert Lh == 1, "module concatenates a single headline token"
    _, Lp, _ = h_para.shape
    D = params["w"].shape[1]
    L = Lp + 1                               # torch .mean divisor over cat dim

    # ---- pad hidden dim so every output chunk is 128-lane aligned ----
    Dp = _round_up(D, 128)
    w = jnp.zeros((F, Dp), jnp.float32).at[:, :D].set(params["w"].astype(jnp.float32))
    b = jnp.zeros((1, Dp), jnp.float32).at[:, :D].set(
        params["b"].reshape(1, D).astype(jnp.float32))

    # ---- pad para length to a bf16 sublane-pack multiple (padded rows mask=0) ----
    Lp_pad = _round_up(Lp, _SUB)

    # ---- batch tile: target >=256 MXU rows, keep >=2 grid steps when possible,
    #      cap by a double-buffered VMEM estimate (v7x: 64 MiB physical). ----
    bn = max(_SUB, _round_up(pl.cdiv(256, Lp_pad), _SUB))
    n_pad_min = _round_up(N, _SUB)
    if n_pad_min < 2 * bn:
        bn = max(_SUB, _round_up(pl.cdiv(n_pad_min, 2), _SUB))

    def _step_bytes(b_):
        ins = b_ * (F * 2 + Lp_pad * F * 2 + Lp_pad * 128 * 4)        # acts bf16 + lane-padded mask
        outs = b_ * (3 * Dp * 4 + Lp_pad * 3 * Dp * 4)                # f32 outputs
        return 2 * (ins + outs) + F * Dp * 2 + 8 * Dp * 4             # dbl-buffered + weights/bias

    while bn > _SUB and _step_bytes(bn) > 24 * 1024 * 1024:
        bn -= _SUB

    n_pad = _round_up(N, bn)
    grid = (n_pad // bn,)

    # ---- pad + cast inputs (bf16 for the MXU / HBM traffic; padded rows mask=0) ----
    x_h = jnp.zeros((n_pad, F), jnp.bfloat16).at[:N].set(
        h_headline.reshape(N, F).astype(jnp.bfloat16))
    x_p = jnp.zeros((n_pad, Lp_pad, F), jnp.bfloat16).at[:N, :Lp].set(
        h_para.astype(jnp.bfloat16))
    mask = jnp.zeros((n_pad, Lp_pad, 1), jnp.float32).at[:N, :Lp, 0].set(
        para_mask.astype(jnp.float32))
    w_bf = w.astype(jnp.bfloat16)

    kernel = functools.partial(_fusion_kernel, inv_len=1.0 / L)

    vh, vp = pl.pallas_call(
        kernel,
        grid=grid,
        in_specs=[
            pl.BlockSpec((bn, F), lambda i: (i, 0)),
            pl.BlockSpec((bn, Lp_pad, F), lambda i: (i, 0, 0)),
            pl.BlockSpec((bn, Lp_pad, 1), lambda i: (i, 0, 0)),
            pl.BlockSpec((F, Dp), lambda i: (0, 0)),
            pl.BlockSpec((1, Dp), lambda i: (0, 0)),
        ],
        out_specs=(
            pl.BlockSpec((bn, 3 * Dp), lambda i: (i, 0)),
            pl.BlockSpec((bn, Lp_pad, 3 * Dp), lambda i: (i, 0, 0)),
        ),
        out_shape=(
            jax.ShapeDtypeStruct((n_pad, 3 * Dp), jnp.float32),
            jax.ShapeDtypeStruct((n_pad, Lp_pad, 3 * Dp), jnp.float32),
        ),
        compiler_params=pltpu.CompilerParams(
            dimension_semantics=("parallel",),
            vmem_limit_bytes=32 * 1024 * 1024,
        ),
    )(x_h, x_p, mask, w_bf, b)

    # ---- strip batch / length / hidden padding in the wrapper ----
    if Dp == D:
        v_headline = vh[:N].reshape(N, 1, 3 * D)
        v_para = vp[:N, :Lp, :]
    else:
        v_headline = jnp.concatenate(
            [vh[:N, 0:D], vh[:N, Dp:Dp + D], vh[:N, 2 * Dp:2 * Dp + D]],
            axis=-1).reshape(N, 1, 3 * D)
        v_para = jnp.concatenate(
            [vp[:N, :Lp, 0:D], vp[:N, :Lp, Dp:Dp + D],
             vp[:N, :Lp, 2 * Dp:2 * Dp + D]], axis=-1)
    return v_headline, v_para


def init_fusion_params(key, in_features, hidden_dim):
    """nn.Linear-style init; weight stored pre-transposed as [F, D]."""
    bound = 1.0 / jnp.sqrt(jnp.float32(in_features))
    k_w, k_b = jax.random.split(key)
    return {
        "w": jax.random.uniform(k_w, (in_features, hidden_dim), jnp.float32,
                                -bound, bound),
        "b": jax.random.uniform(k_b, (1, hidden_dim), jnp.float32,
                                -bound, bound),
    }


def _reference(h_headline, h_para, para_mask, params):
    """Pure-JAX reference matching the PyTorch module (inputs rounded to bf16
    to mirror the kernel's bf16 MXU operands; f32 accumulation)."""
    w = params["w"].astype(jnp.bfloat16).astype(jnp.float32)
    b = params["b"].reshape(1, -1).astype(jnp.float32)
    hh_in = h_headline.astype(jnp.bfloat16).astype(jnp.float32)
    hp_in = h_para.astype(jnp.bfloat16).astype(jnp.float32)
    hh = jax.nn.relu(jnp.einsum("nlf,fd->nld", hh_in, w,
                                precision=jax.lax.Precision.HIGHEST) + b)
    hp = jax.nn.relu(jnp.einsum("nlf,fd->nld", hp_in, w,
                                precision=jax.lax.Precision.HIGHEST) + b)
    m = para_mask.astype(jnp.float32)[..., None]
    mean = jnp.concatenate([hh, hp * m], axis=1).mean(axis=1, keepdims=True)
    hp_ninf = jnp.where(para_mask[..., None], hp, -jnp.inf)
    mx = jnp.concatenate([hh, hp_ninf], axis=1).max(axis=1, keepdims=True)
    vh = jnp.concatenate([hh, mean, mx], axis=-1)
    vp = jnp.concatenate([hp,
                          jnp.broadcast_to(mean, hp.shape),
                          jnp.broadcast_to(mx, hp.shape)], axis=-1)
    return vh, vp


if __name__ == "__main__":
    N, LP, F, D = 6, 8, 64, 128

    key = jax.random.PRNGKey(0)
    k_h, k_p, k_w = jax.random.split(key, 3)

    h_headline = jax.random.normal(k_h, (N, 1, F), jnp.float32)
    h_para = jax.random.normal(k_p, (N, LP, F), jnp.float32)
    lens = jnp.array([LP, 5, 1, LP, 3, 7], dtype=jnp.int32)
    para_mask = jnp.arange(LP, dtype=jnp.int32)[None, :] < lens[:, None]
    params = init_fusion_params(k_w, F, D)

    v_headline, v_para = global_local_fusion_forward(
        h_headline, h_para, para_mask, params)
    v_headline = jax.block_until_ready(v_headline)
    v_para = jax.block_until_ready(v_para)

    assert v_headline.shape == (N, 1, 3 * D), v_headline.shape
    assert v_para.shape == (N, LP, 3 * D), v_para.shape

    ref_vh, ref_vp = _reference(h_headline, h_para, para_mask, params)
    assert bool(jnp.allclose(v_headline, ref_vh, atol=1e-3, rtol=1e-3)), \
        float(jnp.max(jnp.abs(v_headline - ref_vh)))
    assert bool(jnp.allclose(v_para, ref_vp, atol=1e-3, rtol=1e-3)), \
        float(jnp.max(jnp.abs(v_para - ref_vp)))

    print("KERNEL_OK")
</pallas_src>

<mosaic_0001>
module attributes {stable_mosaic.version = 11 : i64} {
  func.func @_fusion_kernel(%arg0: i32, %arg1: memref<16x64xbf16, #tpu.memory_space<vmem>>, %arg2: memref<16x16x64xbf16, #tpu.memory_space<vmem>>, %arg3: memref<16x16x1xf32, #tpu.memory_space<vmem>>, %arg4: memref<64x128xbf16, #tpu.memory_space<vmem>>, %arg5: memref<1x128xf32, #tpu.memory_space<vmem>>, %arg6: memref<16x384xf32, #tpu.memory_space<vmem>>, %arg7: memref<16x16x384xf32, #tpu.memory_space<vmem>>) attributes {dimension_semantics = [#tpu.dimension_semantics<parallel>], iteration_bounds = array<i64: 1>, scalar_prefetch = 0 : i64, scratch_operands = 0 : i64, tpu.core_type = #tpu.core_type<tc>, window_params = [{transform_indices = @transform_0, window_bounds = array<i64: 16, 64>}, {transform_indices = @transform_1, window_bounds = array<i64: 16, 16, 64>}, {transform_indices = @transform_2, window_bounds = array<i64: 16, 16, 1>}, {pipeline_mode = #tpu.pipeline_mode<synchronous>, transform_indices = @transform_3, window_bounds = array<i64: 64, 128>}, {pipeline_mode = #tpu.pipeline_mode<synchronous>, transform_indices = @transform_4, window_bounds = array<i64: 1, 128>}, {transform_indices = @transform_5, window_bounds = array<i64: 16, 384>}, {transform_indices = @transform_6, window_bounds = array<i64: 16, 16, 384>}]} {
    %c0 = arith.constant 0 : index
    %c0_0 = arith.constant 0 : index
    %0 = vector.load %arg4[%c0, %c0_0] : memref<64x128xbf16, #tpu.memory_space<vmem>>, vector<64x128xbf16>
    %c0_1 = arith.constant 0 : index
    %c0_2 = arith.constant 0 : index
    %1 = vector.load %arg5[%c0_1, %c0_2] : memref<1x128xf32, #tpu.memory_space<vmem>>, vector<1x128xf32>
    %c0_3 = arith.constant 0 : index
    %c0_4 = arith.constant 0 : index
    %c0_5 = arith.constant 0 : index
    %2 = vector.load %arg3[%c0_3, %c0_4, %c0_5] : memref<16x16x1xf32, #tpu.memory_space<vmem>>, vector<16x16x1xf32>
    %cst = arith.constant 0.000000e+00 : f32
    %3 = vector.broadcast %cst : f32 to vector<16x16x1xf32>
    %4 = arith.cmpf ogt, %2, %3 : vector<16x16x1xf32>
    %c0_6 = arith.constant 0 : index
    %c0_7 = arith.constant 0 : index
    %5 = vector.load %arg1[%c0_6, %c0_7] : memref<16x64xbf16, #tpu.memory_space<vmem>>, vector<16x64xbf16>
    %cst_8 = arith.constant dense<0.000000e+00> : vector<16x128xf32>
    %6 = tpu.matmul %5, %0, %cst_8 {dimension_numbers = #tpu.dot_dimension_numbers<[1], [0], [0], [1], [0, 0, 1, 1], [], []>} : vector<16x64xbf16>, vector<64x128xbf16>, vector<16x128xf32> -> vector<16x128xf32>
    %7 = vector.broadcast %1 : vector<1x128xf32> to vector<16x128xf32>
    %8 = arith.addf %6, %7 : vector<16x128xf32>
    %cst_9 = arith.constant 0.000000e+00 : f32
    %9 = vector.broadcast %cst_9 : f32 to vector<16x128xf32>
    %10 = arith.maximumf %8, %9 : vector<16x128xf32>
    %c0_10 = arith.constant 0 : index
    %c0_11 = arith.constant 0 : index
    %c0_12 = arith.constant 0 : index
    %11 = vector.load %arg2[%c0_10, %c0_11, %c0_12] : memref<16x16x64xbf16, #tpu.memory_space<vmem>>, vector<16x16x64xbf16>
    %12 = vector.shape_cast %11 : vector<16x16x64xbf16> to vector<256x64xbf16>
    %cst_13 = arith.constant dense<0.000000e+00> : vector<256x128xf32>
    %13 = tpu.matmul %12, %0, %cst_13 {dimension_numbers = #tpu.dot_dimension_numbers<[1], [0], [0], [1], [0, 0, 1, 1], [], []>} : vector<256x64xbf16>, vector<64x128xbf16>, vector<256x128xf32> -> vector<256x128xf32>
    %14 = vector.broadcast %1 : vector<1x128xf32> to vector<256x128xf32>
    %15 = arith.addf %13, %14 : vector<256x128xf32>
    %cst_14 = arith.constant 0.000000e+00 : f32
    %16 = vector.broadcast %cst_14 : f32 to vector<256x128xf32>
    %17 = arith.maximumf %15, %16 : vector<256x128xf32>
    %18 = vector.shape_cast %17 : vector<256x128xf32> to vector<16x16x128xf32>
    %cst_15 = arith.constant 0.000000e+00 : f32
    %19 = vector.shape_cast %4 : vector<16x16x1xi1> to vector<16x16x1xi1>
    %20 = vector.broadcast %19 : vector<16x16x1xi1> to vector<16x16x128xi1>
    %21 = vector.broadcast %cst_15 : f32 to vector<16x16x128xf32>
    %22 = arith.select %20, %18, %21 : vector<16x16x128xi1>, vector<16x16x128xf32>
    %cst_16 = arith.constant dense<0.000000e+00> : vector<16x128xf32>
    %23 = vector.multi_reduction <add>, %22, %cst_16 [1] : vector<16x16x128xf32> to vector<16x128xf32>
    %24 = arith.addf %10, %23 : vector<16x128xf32>
    %cst_17 = arith.constant 0.111111112 : f32
    %25 = vector.broadcast %cst_17 : f32 to vector<16x128xf32>
    %26 = arith.mulf %24, %25 : vector<16x128xf32>
    %cst_18 = arith.constant 0xFF800000 : f32
    %27 = vector.shape_cast %4 : vector<16x16x1xi1> to vector<16x16x1xi1>
    %28 = vector.broadcast %27 : vector<16x16x1xi1> to vector<16x16x128xi1>
    %29 = vector.broadcast %cst_18 : f32 to vector<16x16x128xf32>
    %30 = arith.select %28, %18, %29 : vector<16x16x128xi1>, vector<16x16x128xf32>
    %cst_19 = arith.constant dense<0xFF800000> : vector<16x128xf32>
    %31 = vector.multi_reduction <maximumf>, %30, %cst_19 [1] : vector<16x16x128xf32> to vector<16x128xf32>
    %32 = arith.maximumf %10, %31 : vector<16x128xf32>
    %c0_20 = arith.constant 0 : index
    %c0_21 = arith.constant 0 : index
    %33 = vector.load %arg6[%c0_20, %c0_21] : memref<16x384xf32, #tpu.memory_space<vmem>>, vector<16x128xf32>
    tpu.vector_store %arg6[%c0_20, %c0_21], %10 {strides = array<i32>} : memref<16x384xf32, #tpu.memory_space<vmem>>, vector<16x128xf32>,
    %c0_22 = arith.constant 0 : index
    %c128 = arith.constant 128 : index
    %34 = vector.load %arg6[%c0_22, %c128] : memref<16x384xf32, #tpu.memory_space<vmem>>, vector<16x128xf32>
    tpu.vector_store %arg6[%c0_22, %c128], %26 {strides = array<i32>} : memref<16x384xf32, #tpu.memory_space<vmem>>, vector<16x128xf32>,
    %c0_23 = arith.constant 0 : index
    %c256 = arith.constant 256 : index
    %35 = vector.load %arg6[%c0_23, %c256] : memref<16x384xf32, #tpu.memory_space<vmem>>, vector<16x128xf32>
    tpu.vector_store %arg6[%c0_23, %c256], %32 {strides = array<i32>} : memref<16x384xf32, #tpu.memory_space<vmem>>, vector<16x128xf32>,
    %c0_24 = arith.constant 0 : index
    %c0_25 = arith.constant 0 : index
    %c0_26 = arith.constant 0 : index
    %36 = vector.load %arg7[%c0_24, %c0_25, %c0_26] : memref<16x16x384xf32, #tpu.memory_space<vmem>>, vector<16x16x128xf32>
    tpu.vector_store %arg7[%c0_24, %c0_25, %c0_26], %18 {strides = array<i32>} : memref<16x16x384xf32, #tpu.memory_space<vmem>>, vector<16x16x128xf32>,
    %37 = vector.shape_cast %26 : vector<16x128xf32> to vector<16x1x128xf32>
    %38 = vector.shape_cast %37 : vector<16x1x128xf32> to vector<16x1x128xf32>
    %39 = vector.broadcast %38 : vector<16x1x128xf32> to vector<16x16x128xf32>
    %c0_27 = arith.constant 0 : index
    %c0_28 = arith.constant 0 : index
    %c128_29 = arith.constant 128 : index
    %40 = vector.load %arg7[%c0_27, %c0_28, %c128_29] : memref<16x16x384xf32, #tpu.memory_space<vmem>>, vector<16x16x128xf32>
    tpu.vector_store %arg7[%c0_27, %c0_28, %c128_29], %39 {strides = array<i32>} : memref<16x16x384xf32, #tpu.memory_space<vmem>>, vector<16x16x128xf32>,
    %41 = vector.shape_cast %32 : vector<16x128xf32> to vector<16x1x128xf32>
    %42 = vector.shape_cast %41 : vector<16x1x128xf32> to vector<16x1x128xf32>
    %43 = vector.broadcast %42 : vector<16x1x128xf32> to vector<16x16x128xf32>
    %c0_30 = arith.constant 0 : index
    %c0_31 = arith.constant 0 : index
    %c256_32 = arith.constant 256 : index
    %44 = vector.load %arg7[%c0_30, %c0_31, %c256_32] : memref<16x16x384xf32, #tpu.memory_space<vmem>>, vector<16x16x128xf32>
    tpu.vector_store %arg7[%c0_30, %c0_31, %c256_32], %43 {strides = array<i32>} : memref<16x16x384xf32, #tpu.memory_space<vmem>>, vector<16x16x128xf32>,
    return
  }
  func.func @transform_0(%arg0: i32) -> (i32, i32) {
    %c0_i32 = arith.constant 0 : i32
    %c0_i32_0 = arith.constant 0 : i32
    return %arg0, %c0_i32 : i32, i32
  }
  func.func @transform_1(%arg0: i32) -> (i32, i32, i32) {
    %c0_i32 = arith.constant 0 : i32
    %c0_i32_0 = arith.constant 0 : i32
    %c0_i32_1 = arith.constant 0 : i32
    return %arg0, %c0_i32, %c0_i32_0 : i32, i32, i32
  }
  func.func @transform_2(%arg0: i32) -> (i32, i32, i32) {
    %c0_i32 = arith.constant 0 : i32
    %c0_i32_0 = arith.constant 0 : i32
    %c0_i32_1 = arith.constant 0 : i32
    return %arg0, %c0_i32, %c0_i32_0 : i32, i32, i32
  }
  func.func @transform_3(%arg0: i32) -> (i32, i32) {
    %c0_i32 = arith.constant 0 : i32
    %c0_i32_0 = arith.constant 0 : i32
    %c0_i32_1 = arith.constant 0 : i32
    return %c0_i32, %c0_i32_0 : i32, i32
  }
  func.func @transform_4(%arg0: i32) -> (i32, i32) {
    %c0_i32 = arith.constant 0 : i32
    %c0_i32_0 = arith.constant 0 : i32
    %c0_i32_1 = arith.constant 0 : i32
    return %c0_i32, %c0_i32_0 : i32, i32
  }
  func.func @transform_5(%arg0: i32) -> (i32, i32) {
    %c0_i32 = arith.constant 0 : i32
    %c0_i32_0 = arith.constant 0 : i32
    return %arg0, %c0_i32 : i32, i32
  }
  func.func @transform_6(%arg0: i32) -> (i32, i32, i32) {
    %c0_i32 = arith.constant 0 : i32
    %c0_i32_0 = arith.constant 0 : i32
    %c0_i32_1 = arith.constant 0 : i32
    return %arg0, %c0_i32, %c0_i32_0 : i32, i32, i32
  }
}

</mosaic_0001>

<llo_original>
// kernel: tpu_custom_call.1
$region0: #{tpu_custom_call.1}
  #allocation0 [shape = 'u32[]', space=smem, size = 0x4, offset = 0x4, fixed_abs, tag = 'smem constant byte address 0x4 - core index']
  #allocation1 [shape = 'u32[72,128]{1,0:T(1,128)}', space=vmem, size = 0x9000, scoped, tag = 'internal scratch']
  %s0 = inlined_call_operand.vmem [shape: bf16[16,64], index: 0, kind: input, shape index: {}]
  %s1 = inlined_call_operand.vmem [shape: bf16[16,16,64], index: 1, kind: input, shape index: {}]
  %s2 = inlined_call_operand.vmem [shape: f32[16,16,1], index: 2, kind: input, shape index: {}]
  %s3 = inlined_call_operand.vmem [shape: bf16[64,128], index: 3, kind: input, shape index: {}]
  %s4 = inlined_call_operand.vmem [shape: f32[1,128], index: 4, kind: input, shape index: {}]
  %s5 = inlined_call_operand.hbm [shape: f32[16,384], index: 5, kind: output, shape index: {0}]
  %s6 = inlined_call_operand.hbm [shape: f32[16,16,384], index: 6, kind: output, shape index: {1}]
  %7 = xla_tuple %s5, %s6
  %s8 = sld [smem:[#allocation0]]
  $region38: #{tpu_custom_call.1} parent=0
    _
  %s10 = ssub.s32 1, %s8
  %s11 = scalar_select 0, %s10, %s8
  $region1: #{tpu_custom_call.1} parent=0
    #allocation2 [shape = 'u8[24576]{0}', space=vmem, size = 0x6000, scoped, tag = 'output window, operand 0, single buffered']
    #allocation3 [shape = 's32[1]{0}', space=sflag, size = 0x4, scoped, tag = 'scoped memory for tpu_custom_call.1']
    #allocation4 [shape = 'u8[393216]{0}', space=vmem, size = 0x60000, scoped, tag = 'output window, operand 1, single buffered']
    #allocation5 [shape = 's32[1]{0}', space=sflag, size = 0x4, scoped, tag = 'scoped memory for tpu_custom_call.1']
    %12 = vsyncpa [#allocation3], 0
    %13 = vsyncpa [#allocation5], 0
    // Predicated region
    $region2: #{tpu_custom_call.1} parent=1 // pred_check
      _
    $region3: #{tpu_custom_call.1} parent=1 // pred_check_branch
      %15 = sbr.rel (0) target = $region5
    $region4: #{tpu_custom_call.1} parent=1 // pred_region
      _
    $region5: #{tpu_custom_call.1} parent=1 // pred_fallthru
      _
    // Predicated region
    $region6: #{tpu_custom_call.1} parent=1 // pred_check
      _
    $region7: #{tpu_custom_call.1} parent=1 // pred_check_branch
      %17 = sbr.rel (0) target = $region9
    $region8: #{tpu_custom_call.1} parent=1 // pred_region
      _
    $region9: #{tpu_custom_call.1} parent=1 // pred_fallthru
      _
    // Predicated region
    $region10: #{tpu_custom_call.1} parent=1 // pred_check
      _
    $region11: #{tpu_custom_call.1} parent=1 // pred_check_branch
      %19 = sbr.rel (0) target = $region13
    $region12: #{tpu_custom_call.1} parent=1 // pred_region
      _
    $region13: #{tpu_custom_call.1} parent=1 // pred_fallthru
      _
    // Predicated region
    $region14: #{tpu_custom_call.1} parent=1 // pred_check
      _
    $region15: #{tpu_custom_call.1} parent=1 // pred_check_branch
      %21 = sbr.rel (0) target = $region17
    $region16: #{tpu_custom_call.1} parent=1 // pred_region
      _
    $region17: #{tpu_custom_call.1} parent=1 // pred_fallthru
      _
    // Predicated region
    $region18: #{tpu_custom_call.1} parent=1 // pred_check
      _
    $region19: #{tpu_custom_call.1} parent=1 // pred_check_branch
      %23 = sbr.rel (0) target = $region21
    $region20: #{tpu_custom_call.1} parent=1 // pred_region
      _
    $region21: #{tpu_custom_call.1} parent=1 // pred_fallthru
      _
    %v25 = vld [vmem:[%s3] sm:$0xf]
    %v26 = vld [vmem:[%s3 + $0x4] sm:$0xf]
    %v27 = vld [vmem:[%s3 + $0x8] sm:$0xf]
    %v28 = vld [vmem:[%s3 + $0xc] sm:$0xf]
    %v29 = vld [vmem:[%s3 + $0x10] sm:$0xf]
    %v30 = vld [vmem:[%s3 + $0x14] sm:$0xf]
    %v31 = vld [vmem:[%s3 + $0x18] sm:$0xf]
    %v32 = vld [vmem:[%s3 + $0x1c] sm:$0xf]
    %v33 = vld [vmem:[%s4] sm:$0x1]
    %v34 = vld [vmem:[%s2] sm:$0xff]
    %v35 = vld [vmem:[%s2 + $0x8] sm:$0xff]
    %v36 = vld [vmem:[%s2 + $0x10] sm:$0xff]
    %v37 = vld [vmem:[%s2 + $0x18] sm:$0xff]
    %v38 = vld [vmem:[%s2 + $0x20] sm:$0xff]
    %v39 = vld [vmem:[%s2 + $0x28] sm:$0xff]
    %v40 = vld [vmem:[%s2 + $0x30] sm:$0xff]
    %v41 = vld [vmem:[%s2 + $0x38] sm:$0xff]
    %v42 = vld [vmem:[%s2 + $0x40] sm:$0xff]
    %v43 = vld [vmem:[%s2 + $0x48] sm:$0xff]
    %v44 = vld [vmem:[%s2 + $0x50] sm:$0xff]
    %v45 = vld [vmem:[%s2 + $0x58] sm:$0xff]
    %v46 = vld [vmem:[%s2 + $0x60] sm:$0xff]
    %v47 = vld [vmem:[%s2 + $0x68] sm:$0xff]
    %v48 = vld [vmem:[%s2 + $0x70] sm:$0xff]
    %v49 = vld [vmem:[%s2 + $0x78] sm:$0xff]
    %v50 = vld [vmem:[%s2 + $0x80] sm:$0xff]
    %v51 = vld [vmem:[%s2 + $0x88] sm:$0xff]
    %v52 = vld [vmem:[%s2 + $0x90] sm:$0xff]
    %v53 = vld [vmem:[%s2 + $0x98] sm:$0xff]
    %v54 = vld [vmem:[%s2 + $0xa0] sm:$0xff]
    %v55 = vld [vmem:[%s2 + $0xa8] sm:$0xff]
    %v56 = vld [vmem:[%s2 + $0xb0] sm:$0xff]
    %v57 = vld [vmem:[%s2 + $0xb8] sm:$0xff]
    %v58 = vld [vmem:[%s2 + $0xc0] sm:$0xff]
    %v59 = vld [vmem:[%s2 + $0xc8] sm:$0xff]
    %v60 = vld [vmem:[%s2 + $0xd0] sm:$0xff]
    %v61 = vld [vmem:[%s2 + $0xd8] sm:$0xff]
    %v62 = vld [vmem:[%s2 + $0xe0] sm:$0xff]
    %v63 = vld [vmem:[%s2 + $0xe8] sm:$0xff]
    %v64 = vld [vmem:[%s2 + $0xf0] sm:$0xff]
    %v65 = vld [vmem:[%s2 + $0xf8] sm:$0xff]
    %vm66 = vcmp.gt.f32.partialorder %v34, 0.0
    %vm67 = vcmp.gt.f32.partialorder %v35, 0.0
    %vm68 = vcmp.gt.f32.partialorder %v36, 0.0
    %vm69 = vcmp.gt.f32.partialorder %v37, 0.0
    %vm70 = vcmp.gt.f32.partialorder %v38, 0.0
    %vm71 = vcmp.gt.f32.partialorder %v39, 0.0
    %vm72 = vcmp.gt.f32.partialorder %v40, 0.0
    %vm73 = vcmp.gt.f32.partialorder %v41, 0.0
    %vm74 = vcmp.gt.f32.partialorder %v42, 0.0
    %vm75 = vcmp.gt.f32.partialorder %v43, 0.0
    %vm76 = vcmp.gt.f32.partialorder %v44, 0.0
    %vm77 = vcmp.gt.f32.partialorder %v45, 0.0
    %vm78 = vcmp.gt.f32.partialorder %v46, 0.0
    %vm79 = vcmp.gt.f32.partialorder %v47, 0.0
    %vm80 = vcmp.gt.f32.partialorder %v48, 0.0
    %vm81 = vcmp.gt.f32.partialorder %v49, 0.0
    %vm82 = vcmp.gt.f32.partialorder %v50, 0.0
    %vm83 = vcmp.gt.f32.partialorder %v51, 0.0
    %vm84 = vcmp.gt.f32.partialorder %v52, 0.0
    %vm85 = vcmp.gt.f32.partialorder %v53, 0.0
    %vm86 = vcmp.gt.f32.partialorder %v54, 0.0
    %vm87 = vcmp.gt.f32.partialorder %v55, 0.0
    %vm88 = vcmp.gt.f32.partialorder %v56, 0.0
    %vm89 = vcmp.gt.f32.partialorder %v57, 0.0
    %vm90 = vcmp.gt.f32.partialorder %v58, 0.0
    %vm91 = vcmp.gt.f32.partialorder %v59, 0.0
    %vm92 = vcmp.gt.f32.partialorder %v60, 0.0
    %vm93 = vcmp.gt.f32.partialorder %v61, 0.0
    %vm94 = vcmp.gt.f32.partialorder %v62, 0.0
    %vm95 = vcmp.gt.f32.partialorder %v63, 0.0
    %vm96 = vcmp.gt.f32.partialorder %v64, 0.0
    %vm97 = vcmp.gt.f32.partialorder %v65, 0.0
    %v98 = vld [vmem:[%s0] sm:$0xf]
    %v99 = vld [vmem:[%s0 + $0x4] sm:$0xf]
    %v101 = vperm.slane %v33, 0
    %v105 = vunpack.c.l.b16 %v98
    %v106 = vunpack.c.l.b16 %v99
    %v107 = vpack.c.b16 %v106, %v105
    %v116 = vunpack.c.l.b16 %v25
    %v117 = vunpack.c.l.b16 %v26
    %v118 = vunpack.c.l.b16 %v27
    %v119 = vunpack.c.l.b16 %v28
    %v120 = vunpack.c.l.b16 %v29
    %v121 = vunpack.c.l.b16 %v30
    %v122 = vunpack.c.l.b16 %v31
    %v123 = vunpack.c.l.b16 %v32
    %v124 = vpack.c.b16 %v117, %v116
    %v125 = vpack.c.b16 %v119, %v118
    %v126 = vpack.c.b16 %v121, %v120
    %v127 = vpack.c.b16 %v123, %v122
    %vm132 = vcmask 523264
    %v134 = vsel %vm132, %v107, 0
    %136 = vmatpush.bf16.msra.mxu0 0
    %137 = vmatpush.bf16.msra.mxu0 0
    %138 = vmatpush.bf16.msra.mxu0 0
    %139 = vmatpush.bf16.msra.mxu0 0
    %140 = vmatpush.bf16.msra.mxu0 %v127
    %141 = vmatpush.bf16.msra.mxu0 %v126
    %142 = vmatpush.bf16.msra.mxu0 %v125
    %143 = vmatpush.bf16.msra.mxu0 %v124
    %144 = vmatmul.bf16.gmra.mxu0 %v134
    %v145 = vpop.f32.mrf.mxu0
    %v146 = vadd.f32 %v101, %v145
    %v147 = vpop.f32.mrf.mxu0
    %v148 = vadd.f32 %v101, %v147
    %149 = vdwg.mxu0
    %v150 = vmax.f32 %v146, 0.0
    %v151 = vmax.f32 %v148, 0.0
    %v152 = vld [vmem:[%s1] sm:$0xf]
    %v153 = vld [vmem:[%s1 + $0x4] sm:$0xf]
    %v154 = vld [vmem:[%s1 + $0x8] sm:$0xf]
    %v155 = vld [vmem:[%s1 + $0xc] sm:$0xf]
    %v156 = vld [vmem:[%s1 + $0x10] sm:$0xf]
    %v157 = vld [vmem:[%s1 + $0x14] sm:$0xf]
    %v158 = vld [vmem:[%s1 + $0x18] sm:$0xf]
    %v159 = vld [vmem:[%s1 + $0x1c] sm:$0xf]
    %v160 = vld [vmem:[%s1 + $0x20] sm:$0xf]
    %v161 = vld [vmem:[%s1 + $0x24] sm:$0xf]
    %v162 = vld [vmem:[%s1 + $0x28] sm:$0xf]
    %v163 = vld [vmem:[%s1 + $0x2c] sm:$0xf]
    %v164 = vld [vmem:[%s1 + $0x30] sm:$0xf]
    %v165 = vld [vmem:[%s1 + $0x34] sm:$0xf]
    %v166 = vld [vmem:[%s1 + $0x38] sm:$0xf]
    %v167 = vld [vmem:[%s1 + $0x3c] sm:$0xf]
    %v168 = vld [vmem:[%s1 + $0x40] sm:$0xf]
    %v169 = vld [vmem:[%s1 + $0x44] sm:$0xf]
    %v170 = vld [vmem:[%s1 + $0x48] sm:$0xf]
    %v171 = vld [vmem:[%s1 + $0x4c] sm:$0xf]
    %v172 = vld [vmem:[%s1 + $0x50] sm:$0xf]
    %v173 = vld [vmem:[%s1 + $0x54] sm:$0xf]
    %v174 = vld [vmem:[%s1 + $0x58] sm:$0xf]
    %v175 = vld [vmem:[%s1 + $0x5c] sm:$0xf]
    %v176 = vld [vmem:[%s1 + $0x60] sm:$0xf]
    %v177 = vld [vmem:[%s1 + $0x64] sm:$0xf]
    %v178 = vld [vmem:[%s1 + $0x68] sm:$0xf]
    %v179 = vld [vmem:[%s1 + $0x6c] sm:$0xf]
    %v180 = vld [vmem:[%s1 + $0x70] sm:$0xf]
    %v181 = vld [vmem:[%s1 + $0x74] sm:$0xf]
    %v182 = vld [vmem:[%s1 + $0x78] sm:$0xf]
    %v183 = vld [vmem:[%s1 + $0x7c] sm:$0xf]
    %v216 = vunpack.c.l.b16 %v152
    %v217 = vunpack.c.l.b16 %v153
    %v218 = vunpack.c.l.b16 %v154
    %v219 = vunpack.c.l.b16 %v155
    %v220 = vunpack.c.l.b16 %v156
    %v221 = vunpack.c.l.b16 %v157
    %v222 = vunpack.c.l.b16 %v158
    %v223 = vunpack.c.l.b16 %v159
    %v224 = vunpack.c.l.b16 %v160
    %v225 = vunpack.c.l.b16 %v161
    %v226 = vunpack.c.l.b16 %v162
    %v227 = vunpack.c.l.b16 %v163
    %v228 = vunpack.c.l.b16 %v164
    %v229 = vunpack.c.l.b16 %v165
    %v230 = vunpack.c.l.b16 %v166
    %v231 = vunpack.c.l.b16 %v167
    %v232 = vunpack.c.l.b16 %v168
    %v233 = vunpack.c.l.b16 %v169
    %v234 = vunpack.c.l.b16 %v170
    %v235 = vunpack.c.l.b16 %v171
    %v236 = vunpack.c.l.b16 %v172
    %v237 = vunpack.c.l.b16 %v173
    %v238 = vunpack.c.l.b16 %v174
    %v239 = vunpack.c.l.b16 %v175
    %v240 = vunpack.c.l.b16 %v176
    %v241 = vunpack.c.l.b16 %v177
    %v242 = vunpack.c.l.b16 %v178
    %v243 = vunpack.c.l.b16 %v179
    %v244 = vunpack.c.l.b16 %v180
    %v245 = vunpack.c.l.b16 %v181
    %v246 = vunpack.c.l.b16 %v182
    %v247 = vunpack.c.l.b16 %v183
    %v248 = vpack.c.b16 %v217, %v216
    %v249 = vpack.c.b16 %v219, %v218
    %v250 = vpack.c.b16 %v221, %v220
    %v251 = vpack.c.b16 %v223, %v222
    %v252 = vpack.c.b16 %v225, %v224
    %v253 = vpack.c.b16 %v227, %v226
    %v254 = vpack.c.b16 %v229, %v228
    %v255 = vpack.c.b16 %v231, %v230
    %v256 = vpack.c.b16 %v233, %v232
    %v257 = vpack.c.b16 %v235, %v234
    %v258 = vpack.c.b16 %v237, %v236
    %v259 = vpack.c.b16 %v239, %v238
    %v260 = vpack.c.b16 %v241, %v240
    %v261 = vpack.c.b16 %v243, %v242
    %v262 = vpack.c.b16 %v245, %v244
    %v263 = vpack.c.b16 %v247, %v246
    %v265 = vsel %vm132, %v248, 0
    %v268 = vsel %vm132, %v249, 0
    %v271 = vsel %vm132, %v250, 0
    %v274 = vsel %vm132, %v251, 0
    %v277 = vsel %vm132, %v252, 0
    %v280 = vsel %vm132, %v253, 0
    %v283 = vsel %vm132, %v254, 0
    %v286 = vsel %vm132, %v255, 0
    %v289 = vsel %vm132, %v256, 0
    %v292 = vsel %vm132, %v257, 0
    %v295 = vsel %vm132, %v258, 0
    %v298 = vsel %vm132, %v259, 0
    %v301 = vsel %vm132, %v260, 0
    %v304 = vsel %vm132, %v261, 0
    %v307 = vsel %vm132, %v262, 0
    %v310 = vsel %vm132, %v263, 0
    %312 = vmatpush.bf16.msra.mxu0 0
    %313 = vmatpush.bf16.msra.mxu0 0
    %314 = vmatpush.bf16.msra.mxu0 0
    %315 = vmatpush.bf16.msra.mxu0 0
    %316 = vmatpush.bf16.msra.mxu0 %v127
    %317 = vmatpush.bf16.msra.mxu0 %v126
    %318 = vmatpush.bf16.msra.mxu0 %v125
    %319 = vmatpush.bf16.msra.mxu0 %v124
    %320 = vmatmul.bf16.gmra.mxu0 %v265
    %v321 = vpop.f32.mrf.mxu0
    %v322 = vadd.f32 %v101, %v321
    %v323 = vpop.f32.mrf.mxu0
    %v324 = vadd.f32 %v101, %v323
    %325 = vmatmul.bf16.gmra.mxu0 %v268
    %v326 = vpop.f32.mrf.mxu0
    %v327 = vadd.f32 %v101, %v326
    %v328 = vpop.f32.mrf.mxu0
    %v329 = vadd.f32 %v101, %v328
    %330 = vmatmul.bf16.gmra.mxu0 %v271
    %v331 = vpop.f32.mrf.mxu0
    %v332 = vadd.f32 %v101, %v331
    %v333 = vpop.f32.mrf.mxu0
    %v334 = vadd.f32 %v101, %v333
    %335 = vmatmul.bf16.gmra.mxu0 %v274
    %v336 = vpop.f32.mrf.mxu0
    %v337 = vadd.f32 %v101, %v336
    %v338 = vpop.f32.mrf.mxu0
    %v339 = vadd.f32 %v101, %v338
    %340 = vmatmul.bf16.gmra.mxu0 %v277
    %v341 = vpop.f32.mrf.mxu0
    %v342 = vadd.f32 %v101, %v341
    %v343 = vpop.f32.mrf.mxu0
    %v344 = vadd.f32 %v101, %v343
    %345 = vmatmul.bf16.gmra.mxu0 %v280
    %v346 = vpop.f32.mrf.mxu0
    %v347 = vadd.f32 %v101, %v346
    %v348 = vpop.f32.mrf.mxu0
    %v349 = vadd.f32 %v101, %v348
    %350 = vmatmul.bf16.gmra.mxu0 %v283
    %v351 = vpop.f32.mrf.mxu0
    %v352 = vadd.f32 %v101, %v351
    %v353 = vpop.f32.mrf.mxu0
    %v354 = vadd.f32 %v101, %v353
    %355 = vmatmul.bf16.gmra.mxu0 %v286
    %v356 = vpop.f32.mrf.mxu0
    %v357 = vadd.f32 %v101, %v356
    %v358 = vpop.f32.mrf.mxu0
    %v359 = vadd.f32 %v101, %v358
    %360 = vmatmul.bf16.gmra.mxu0 %v289
    %v361 = vpop.f32.mrf.mxu0
    %v362 = vadd.f32 %v101, %v361
    %v363 = vpop.f32.mrf.mxu0
    %v364 = vadd.f32 %v101, %v363
    %365 = vmatmul.bf16.gmra.mxu0 %v292
    %v366 = vpop.f32.mrf.mxu0
    %v367 = vadd.f32 %v101, %v366
    %v368 = vpop.f32.mrf.mxu0
    %v369 = vadd.f32 %v101, %v368
    %370 = vmatmul.bf16.gmra.mxu0 %v295
    %v371 = vpop.f32.mrf.mxu0
    %v372 = vadd.f32 %v101, %v371
    %v373 = vpop.f32.mrf.mxu0
    %v374 = vadd.f32 %v101, %v373
    %375 = vmatmul.bf16.gmra.mxu0 %v298
    %v376 = vpop.f32.mrf.mxu0
    %v377 = vadd.f32 %v101, %v376
    %v378 = vpop.f32.mrf.mxu0
    %v379 = vadd.f32 %v101, %v378
    %380 = vmatmul.bf16.gmra.mxu0 %v301
    %v381 = vpop.f32.mrf.mxu0
    %v382 = vadd.f32 %v101, %v381
    %v383 = vpop.f32.mrf.mxu0
    %v384 = vadd.f32 %v101, %v383
    %385 = vmatmul.bf16.gmra.mxu0 %v304
    %v386 = vpop.f32.mrf.mxu0
    %v387 = vadd.f32 %v101, %v386
    %v388 = vpop.f32.mrf.mxu0
    %v389 = vadd.f32 %v101, %v388
    %390 = vmatmul.bf16.gmra.mxu0 %v307
    %v391 = vpop.f32.mrf.mxu0
    %v392 = vadd.f32 %v101, %v391
    %v393 = vpop.f32.mrf.mxu0
    %v394 = vadd.f32 %v101, %v393
    %395 = vmatmul.bf16.gmra.mxu0 %v310
    %v396 = vpop.f32.mrf.mxu0
    %v397 = vadd.f32 %v101, %v396
    %v398 = vpop.f32.mrf.mxu0
    %v399 = vadd.f32 %v101, %v398
    %400 = vdwg.mxu0
    %v401 = vmax.f32 %v322, 0.0
    %v402 = vmax.f32 %v324, 0.0
    %v403 = vmax.f32 %v327, 0.0
    %v404 = vmax.f32 %v329, 0.0
    %v405 = vmax.f32 %v332, 0.0
    %v406 = vmax.f32 %v334, 0.0
    %v407 = vmax.f32 %v337, 0.0
    %v408 = vmax.f32 %v339, 0.0
    %v409 = vmax.f32 %v342, 0.0
    %v410 = vmax.f32 %v344, 0.0
    %v411 = vmax.f32 %v347, 0.0
    %v412 = vmax.f32 %v349, 0.0
    %v413 = vmax.f32 %v352, 0.0
    %v414 = vmax.f32 %v354, 0.0
    %v415 = vmax.f32 %v357, 0.0
    %v416 = vmax.f32 %v359, 0.0
    %v417 = vmax.f32 %v362, 0.0
    %v418 = vmax.f32 %v364, 0.0
    %v419 = vmax.f32 %v367, 0.0
    %v420 = vmax.f32 %v369, 0.0
    %v421 = vmax.f32 %v372, 0.0
    %v422 = vmax.f32 %v374, 0.0
    %v423 = vmax.f32 %v377, 0.0
    %v424 = vmax.f32 %v379, 0.0
    %v425 = vmax.f32 %v382, 0.0
    %v426 = vmax.f32 %v384, 0.0
    %v427 = vmax.f32 %v387, 0.0
    %v428 = vmax.f32 %v389, 0.0
    %v429 = vmax.f32 %v392, 0.0
    %v430 = vmax.f32 %v394, 0.0
    %v431 = vmax.f32 %v397, 0.0
    %v432 = vmax.f32 %v399, 0.0
    %v433 = vsel %vm66, 1, 0
    %v434 = vsel %vm67, 1, 0
    %v435 = vsel %vm68, 1, 0
    %v436 = vsel %vm69, 1, 0
    %v437 = vsel %vm70, 1, 0
    %v438 = vsel %vm71, 1, 0
    %v439 = vsel %vm72, 1, 0
    %v440 = vsel %vm73, 1, 0
    %v441 = vsel %vm74, 1, 0
    %v442 = vsel %vm75, 1, 0
    %v443 = vsel %vm76, 1, 0
    %v444 = vsel %vm77, 1, 0
    %v445 = vsel %vm78, 1, 0
    %v446 = vsel %vm79, 1, 0
    %v447 = vsel %vm80, 1, 0
    %v448 = vsel %vm81, 1, 0
    %v449 = vsel %vm82, 1, 0
    %v450 = vsel %vm83, 1, 0
    %v451 = vsel %vm84, 1, 0
    %v452 = vsel %vm85, 1, 0
    %v453 = vsel %vm86, 1, 0
    %v454 = vsel %vm87, 1, 0
    %v455 = vsel %vm88, 1, 0
    %v456 = vsel %vm89, 1, 0
    %v457 = vsel %vm90, 1, 0
    %v458 = vsel %vm91, 1, 0
    %v459 = vsel %vm92, 1, 0
    %v460 = vsel %vm93, 1, 0
    %v461 = vsel %vm94, 1, 0
    %v462 = vsel %vm95, 1, 0
    %v463 = vsel %vm96, 1, 0
    %v464 = vsel %vm97, 1, 0
    %465 = vset.pattern.permute.xlu0 0
    %466 = vperm.xlu0 %465, %v433
    %v467 = vpop.permute.xlu0 %466
    %468 = vset.pattern.permute.xlu0 0
    %469 = vperm.xlu0 %468, %v434
    %v470 = vpop.permute.xlu0 %469
    %471 = vset.pattern.permute.xlu0 0
    %472 = vperm.xlu0 %471, %v435
    %v473 = vpop.permute.xlu0 %472
    %474 = vset.pattern.permute.xlu0 0
    %475 = vperm.xlu0 %474, %v436
    %v476 = vpop.permute.xlu0 %475
    %477 = vset.pattern.permute.xlu0 0
    %478 = vperm.xlu0 %477, %v437
    %v479 = vpop.permute.xlu0 %478
    %480 = vset.pattern.permute.xlu0 0
    %481 = vperm.xlu0 %480, %v438
    %v482 = vpop.permute.xlu0 %481
    %483 = vset.pattern.permute.xlu0 0
    %484 = vperm.xlu0 %483, %v439
    %v485 = vpop.permute.xlu0 %484
    %486 = vset.pattern.permute.xlu0 0
    %487 = vperm.xlu0 %486, %v440
    %v488 = vpop.permute.xlu0 %487
    %489 = vset.pattern.permute.xlu0 0
    %490 = vperm.xlu0 %489, %v441
    %v491 = vpop.permute.xlu0 %490
    %492 = vset.pattern.permute.xlu0 0
    %493 = vperm.xlu0 %492, %v442
    %v494 = vpop.permute.xlu0 %493
    %495 = vset.pattern.permute.xlu0 0
    %496 = vperm.xlu0 %495, %v443
    %v497 = vpop.permute.xlu0 %496
    %498 = vset.pattern.permute.xlu0 0
    %499 = vperm.xlu0 %498, %v444
    %v500 = vpop.permute.xlu0 %499
    %501 = vset.pattern.permute.xlu0 0
    %502 = vperm.xlu0 %501, %v445
    %v503 = vpop.permute.xlu0 %502
    %504 = vset.pattern.permute.xlu0 0
    %505 = vperm.xlu0 %504, %v446
    %v506 = vpop.permute.xlu0 %505
    %507 = vset.pattern.permute.xlu0 0
    %508 = vperm.xlu0 %507, %v447
    %v509 = vpop.permute.xlu0 %508
    %510 = vset.pattern.permute.xlu0 0
    %511 = vperm.xlu0 %510, %v448
    %v512 = vpop.permute.xlu0 %511
    %513 = vset.pattern.permute.xlu0 0
    %514 = vperm.xlu0 %513, %v449
    %v515 = vpop.permute.xlu0 %514
    %516 = vset.pattern.permute.xlu0 0
    %517 = vperm.xlu0 %516, %v450
    %v518 = vpop.permute.xlu0 %517
    %519 = vset.pattern.permute.xlu0 0
    %520 = vperm.xlu0 %519, %v451
    %v521 = vpop.permute.xlu0 %520
    %522 = vset.pattern.permute.xlu0 0
    %523 = vperm.xlu0 %522, %v452
    %v524 = vpop.permute.xlu0 %523
    %525 = vset.pattern.permute.xlu0 0
    %526 = vperm.xlu0 %525, %v453
    %v527 = vpop.permute.xlu0 %526
    %528 = vset.pattern.permute.xlu0 0
    %529 = vperm.xlu0 %528, %v454
    %v530 = vpop.permute.xlu0 %529
    %531 = vset.pattern.permute.xlu0 0
    %532 = vperm.xlu0 %531, %v455
    %v533 = vpop.permute.xlu0 %532
    %534 = vset.pattern.permute.xlu0 0
    %535 = vperm.xlu0 %534, %v456
    %v536 = vpop.permute.xlu0 %535
    %537 = vset.pattern.permute.xlu0 0
    %538 = vperm.xlu0 %537, %v457
    %v539 = vpop.permute.xlu0 %538
    %540 = vset.pattern.permute.xlu0 0
    %541 = vperm.xlu0 %540, %v458
    %v542 = vpop.permute.xlu0 %541
    %543 = vset.pattern.permute.xlu0 0
    %544 = vperm.xlu0 %543, %v459
    %v545 = vpop.permute.xlu0 %544
    %546 = vset.pattern.permute.xlu0 0
    %547 = vperm.xlu0 %546, %v460
    %v548 = vpop.permute.xlu0 %547
    %549 = vset.pattern.permute.xlu0 0
    %550 = vperm.xlu0 %549, %v461
    %v551 = vpop.permute.xlu0 %550
    %552 = vset.pattern.permute.xlu0 0
    %553 = vperm.xlu0 %552, %v462
    %v554 = vpop.permute.xlu0 %553
    %555 = vset.pattern.permute.xlu0 0
    %556 = vperm.xlu0 %555, %v463
    %v557 = vpop.permute.xlu0 %556
    %558 = vset.pattern.permute.xlu0 0
    %559 = vperm.xlu0 %558, %v464
    %v560 = vpop.permute.xlu0 %559
    %vm561 = vcmp.eq.s32.totalorder %v467, 1
    %vm562 = vcmp.eq.s32.totalorder %v470, 1
    %vm563 = vcmp.eq.s32.totalorder %v473, 1
    %vm564 = vcmp.eq.s32.totalorder %v476, 1
    %vm565 = vcmp.eq.s32.totalorder %v479, 1
    %vm566 = vcmp.eq.s32.totalorder %v482, 1
    %vm567 = vcmp.eq.s32.totalorder %v485, 1
    %vm568 = vcmp.eq.s32.totalorder %v488, 1
    %vm569 = vcmp.eq.s32.totalorder %v491, 1
    %vm570 = vcmp.eq.s32.totalorder %v494, 1
    %vm571 = vcmp.eq.s32.totalorder %v497, 1
    %vm572 = vcmp.eq.s32.totalorder %v500, 1
    %vm573 = vcmp.eq.s32.totalorder %v503, 1
    %vm574 = vcmp.eq.s32.totalorder %v506, 1
    %vm575 = vcmp.eq.s32.totalorder %v509, 1
    %vm576 = vcmp.eq.s32.totalorder %v512, 1
    %vm577 = vcmp.eq.s32.totalorder %v515, 1
    %vm578 = vcmp.eq.s32.totalorder %v518, 1
    %vm579 = vcmp.eq.s32.totalorder %v521, 1
    %vm580 = vcmp.eq.s32.totalorder %v524, 1
    %vm581 = vcmp.eq.s32.totalorder %v527, 1
    %vm582 = vcmp.eq.s32.totalorder %v530, 1
    %vm583 = vcmp.eq.s32.totalorder %v533, 1
    %vm584 = vcmp.eq.s32.totalorder %v536, 1
    %vm585 = vcmp.eq.s32.totalorder %v539, 1
    %vm586 = vcmp.eq.s32.totalorder %v542, 1
    %vm587 = vcmp.eq.s32.totalorder %v545, 1
    %vm588 = vcmp.eq.s32.totalorder %v548, 1
    %vm589 = vcmp.eq.s32.totalorder %v551, 1
    %vm590 = vcmp.eq.s32.totalorder %v554, 1
    %vm591 = vcmp.eq.s32.totalorder %v557, 1
    %vm592 = vcmp.eq.s32.totalorder %v560, 1
    %v593 = vsel %vm561, %v401, 0.0
    %v594 = vsel %vm562, %v402, 0.0
    %v595 = vsel %vm563, %v403, 0.0
    %v596 = vsel %vm564, %v404, 0.0
    %v597 = vsel %vm565, %v405, 0.0
    %v598 = vsel %vm566, %v406, 0.0
    %v599 = vsel %vm567, %v407, 0.0
    %v600 = vsel %vm568, %v408, 0.0
    %v601 = vsel %vm569, %v409, 0.0
    %v602 = vsel %vm570, %v410, 0.0
    %v603 = vsel %vm571, %v411, 0.0
    %v604 = vsel %vm572, %v412, 0.0
    %v605 = vsel %vm573, %v413, 0.0
    %v606 = vsel %vm574, %v414, 0.0
    %v607 = vsel %vm575, %v415, 0.0
    %v608 = vsel %vm576, %v416, 0.0
    %v609 = vsel %vm577, %v417, 0.0
    %v610 = vsel %vm578, %v418, 0.0
    %v611 = vsel %vm579, %v419, 0.0
    %v612 = vsel %vm580, %v420, 0.0
    %v613 = vsel %vm581, %v421, 0.0
    %v614 = vsel %vm582, %v422, 0.0
    %v615 = vsel %vm583, %v423, 0.0
    %v616 = vsel %vm584, %v424, 0.0
    %v617 = vsel %vm585, %v425, 0.0
    %v618 = vsel %vm586, %v426, 0.0
    %v619 = vsel %vm587, %v427, 0.0
    %v620 = vsel %vm588, %v428, 0.0
    %v621 = vsel %vm589, %v429, 0.0
    %v622 = vsel %vm590, %v430, 0.0
    %v623 = vsel %vm591, %v431, 0.0
    %v624 = vsel %vm592, %v432, 0.0
    %v625 = vadd.f32 %v593, %v594
    %v626 = vrot.slane %v625, 4
    %v627 = vadd.f32 %v625, %v626
    %v628 = vrot.slane %v627, 2
    %v629 = vadd.f32 %v627, %v628
    %v630 = vrot.slane %v629, 1
    %v631 = vadd.f32 %v629, %v630
    %v632 = vadd.f32 %v595, %v596
    %v633 = vrot.slane %v632, 4
    %v634 = vadd.f32 %v632, %v633
    %v635 = vrot.slane %v634, 2
    %v636 = vadd.f32 %v634, %v635
    %v637 = vrot.slane %v636, 1
    %v638 = vadd.f32 %v636, %v637
    %v639 = vadd.f32 %v597, %v598
    %v640 = vrot.slane %v639, 4
    %v641 = vadd.f32 %v639, %v640
    %v642 = vrot.slane %v641, 2
    %v643 = vadd.f32 %v641, %v642
    %v644 = vrot.slane %v643, 1
    %v645 = vadd.f32 %v643, %v644
    %v646 = vadd.f32 %v599, %v600
    %v647 = vrot.slane %v646, 4
    %v648 = vadd.f32 %v646, %v647
    %v649 = vrot.slane %v648, 2
    %v650 = vadd.f32 %v648, %v649
    %v651 = vrot.slane %v650, 1
    %v652 = vadd.f32 %v650, %v651
    %v653 = vadd.f32 %v601, %v602
    %v654 = vrot.slane %v653, 4
    %v655 = vadd.f32 %v653, %v654
    %v656 = vrot.slane %v655, 2
    %v657 = vadd.f32 %v655, %v656
    %v658 = vrot.slane %v657, 1
    %v659 = vadd.f32 %v657, %v658
    %v660 = vadd.f32 %v603, %v604
    %v661 = vrot.slane %v660, 4
    %v662 = vadd.f32 %v660, %v661
    %v663 = vrot.slane %v662, 2
    %v664 = vadd.f32 %v662, %v663
    %v665 = vrot.slane %v664, 1
    %v666 = vadd.f32 %v664, %v665
    %v667 = vadd.f32 %v605, %v606
    %v668 = vrot.slane %v667, 4
    %v669 = vadd.f32 %v667, %v668
    %v670 = vrot.slane %v669, 2
    %v671 = vadd.f32 %v669, %v670
    %v672 = vrot.slane %v671, 1
    %v673 = vadd.f32 %v671, %v672
    %v674 = vadd.f32 %v607, %v608
    %v675 = vrot.slane %v674, 4
    %v676 = vadd.f32 %v674, %v675
    %v677 = vrot.slane %v676, 2
    %v678 = vadd.f32 %v676, %v677
    %v679 = vrot.slane %v678, 1
    %v680 = vadd.f32 %v678, %v679
    %v681 = vadd.f32 %v609, %v610
    %v682 = vrot.slane %v681, 4
    %v683 = vadd.f32 %v681, %v682
    %v684 = vrot.slane %v683, 2
    %v685 = vadd.f32 %v683, %v684
    %v686 = vrot.slane %v685, 1
    %v687 = vadd.f32 %v685, %v686
    %v688 = vadd.f32 %v611, %v612
    %v689 = vrot.slane %v688, 4
    %v690 = vadd.f32 %v688, %v689
    %v691 = vrot.slane %v690, 2
    %v692 = vadd.f32 %v690, %v691
    %v693 = vrot.slane %v692, 1
    %v694 = vadd.f32 %v692, %v693
    %v695 = vadd.f32 %v613, %v614
    %v696 = vrot.slane %v695, 4
    %v697 = vadd.f32 %v695, %v696
    %v698 = vrot.slane %v697, 2
    %v699 = vadd.f32 %v697, %v698
    %v700 = vrot.slane %v699, 1
    %v701 = vadd.f32 %v699, %v700
    %v702 = vadd.f32 %v615, %v616
    %v703 = vrot.slane %v702, 4
    %v704 = vadd.f32 %v702, %v703
    %v705 = vrot.slane %v704, 2
    %v706 = vadd.f32 %v704, %v705
    %v707 = vrot.slane %v706, 1
    %v708 = vadd.f32 %v706, %v707
    %v709 = vadd.f32 %v617, %v618
    %v710 = vrot.slane %v709, 4
    %v711 = vadd.f32 %v709, %v710
    %v712 = vrot.slane %v711, 2
    %v713 = vadd.f32 %v711, %v712
    %v714 = vrot.slane %v713, 1
    %v715 = vadd.f32 %v713, %v714
    %v716 = vadd.f32 %v619, %v620
    %v717 = vrot.slane %v716, 4
    %v718 = vadd.f32 %v716, %v717
    %v719 = vrot.slane %v718, 2
    %v720 = vadd.f32 %v718, %v719
    %v721 = vrot.slane %v720, 1
    %v722 = vadd.f32 %v720, %v721
    %v723 = vadd.f32 %v621, %v622
    %v724 = vrot.slane %v723, 4
    %v725 = vadd.f32 %v723, %v724
    %v726 = vrot.slane %v725, 2
    %v727 = vadd.f32 %v725, %v726
    %v728 = vrot.slane %v727, 1
    %v729 = vadd.f32 %v727, %v728
    %v730 = vadd.f32 %v623, %v624
    %v731 = vrot.slane %v730, 4
    %v732 = vadd.f32 %v730, %v731
    %v733 = vrot.slane %v732, 2
    %v734 = vadd.f32 %v732, %v733
    %v735 = vrot.slane %v734, 1
    %v736 = vadd.f32 %v734, %v735
    %vm753 = vcmask 1041409
    %v754 = vsel %vm753, %v638, %v631
    %vm755 = vcmask 1042434
    %v756 = vsel %vm755, %v645, %v754
    %vm757 = vcmask 1043459
    %v758 = vsel %vm757, %v652, %v756
    %vm759 = vcmask 1044484
    %v760 = vsel %vm759, %v659, %v758
    %vm761 = vcmask 1045509
    %v762 = vsel %vm761, %v666, %v760
    %vm763 = vcmask 1046534
    %v764 = vsel %vm763, %v673, %v762
    %vm765 = vcmask 1047559
    %v766 = vsel %vm765, %v680, %v764
    %v767 = vsel %vm753, %v694, %v687
    %v768 = vsel %vm755, %v701, %v767
    %v769 = vsel %vm757, %v708, %v768
    %v770 = vsel %vm759, %v715, %v769
    %v771 = vsel %vm761, %v722, %v770
    %v772 = vsel %vm763, %v729, %v771
    %v773 = vsel %vm765, %v736, %v772
    %v776 = vadd.f32 %v150, %v766
    %v777 = vadd.f32 %v151, %v773
    %v778 = vmul.f32 %v776, 0.11111111
    %v779 = vmul.f32 %v777, 0.11111111
    %v780 = vsel %vm561, %v401, -inf
    %v781 = vsel %vm562, %v402, -inf
    %v782 = vsel %vm563, %v403, -inf
    %v783 = vsel %vm564, %v404, -inf
    %v784 = vsel %vm565, %v405, -inf
    %v785 = vsel %vm566, %v406, -inf
    %v786 = vsel %vm567, %v407, -inf
    %v787 = vsel %vm568, %v408, -inf
    %v788 = vsel %vm569, %v409, -inf
    %v789 = vsel %vm570, %v410, -inf
    %v790 = vsel %vm571, %v411, -inf
    %v791 = vsel %vm572, %v412, -inf
    %v792 = vsel %vm573, %v413, -inf
    %v793 = vsel %vm574, %v414, -inf
    %v794 = vsel %vm575, %v415, -inf
    %v795 = vsel %vm576, %v416, -inf
    %v796 = vsel %vm577, %v417, -inf
    %v797 = vsel %vm578, %v418, -inf
    %v798 = vsel %vm579, %v419, -inf
    %v799 = vsel %vm580, %v420, -inf
    %v800 = vsel %vm581, %v421, -inf
    %v801 = vsel %vm582, %v422, -inf
    %v802 = vsel %vm583, %v423, -inf
    %v803 = vsel %vm584, %v424, -inf
    %v804 = vsel %vm585, %v425, -inf
    %v805 = vsel %vm586, %v426, -inf
    %v806 = vsel %vm587, %v427, -inf
    %v807 = vsel %vm588, %v428, -inf
    %v808 = vsel %vm589, %v429, -inf
    %v809 = vsel %vm590, %v430, -inf
    %v810 = vsel %vm591, %v431, -inf
    %v811 = vsel %vm592, %v432, -inf
    %v812 = vmax.f32 %v780, %v781
    %v813 = vrot.slane %v812, 4
    %v814 = vmax.f32 %v812, %v813
    %v815 = vrot.slane %v814, 2
    %v816 = vmax.f32 %v814, %v815
    %v817 = vrot.slane %v816, 1
    %v818 = vmax.f32 %v816, %v817
    %v819 = vmax.f32 %v782, %v783
    %v820 = vrot.slane %v819, 4
    %v821 = vmax.f32 %v819, %v820
    %v822 = vrot.slane %v821, 2
    %v823 = vmax.f32 %v821, %v822
    %v824 = vrot.slane %v823, 1
    %v825 = vmax.f32 %v823, %v824
    %v826 = vmax.f32 %v784, %v785
    %v827 = vrot.slane %v826, 4
    %v828 = vmax.f32 %v826, %v827
    %v829 = vrot.slane %v828, 2
    %v830 = vmax.f32 %v828, %v829
    %v831 = vrot.slane %v830, 1
    %v832 = vmax.f32 %v830, %v831
    %v833 = vmax.f32 %v786, %v787
    %v834 = vrot.slane %v833, 4
    %v835 = vmax.f32 %v833, %v834
    %v836 = vrot.slane %v835, 2
    %v837 = vmax.f32 %v835, %v836
    %v838 = vrot.slane %v837, 1
    %v839 = vmax.f32 %v837, %v838
    %v840 = vmax.f32 %v788, %v789
    %v841 = vrot.slane %v840, 4
    %v842 = vmax.f32 %v840, %v841
    %v843 = vrot.slane %v842, 2
    %v844 = vmax.f32 %v842, %v843
    %v845 = vrot.slane %v844, 1
    %v846 = vmax.f32 %v844, %v845
    %v847 = vmax.f32 %v790, %v791
    %v848 = vrot.slane %v847, 4
    %v849 = vmax.f32 %v847, %v848
    %v850 = vrot.slane %v849, 2
    %v851 = vmax.f32 %v849, %v850
    %v852 = vrot.slane %v851, 1
    %v853 = vmax.f32 %v851, %v852
    %v854 = vmax.f32 %v792, %v793
    %v855 = vrot.slane %v854, 4
    %v856 = vmax.f32 %v854, %v855
    %v857 = vrot.slane %v856, 2
    %v858 = vmax.f32 %v856, %v857
    %v859 = vrot.slane %v858, 1
    %v860 = vmax.f32 %v858, %v859
    %v861 = vmax.f32 %v794, %v795
    %v862 = vrot.slane %v861, 4
    %v863 = vmax.f32 %v861, %v862
    %v864 = vrot.slane %v863, 2
    %v865 = vmax.f32 %v863, %v864
    %v866 = vrot.slane %v865, 1
    %v867 = vmax.f32 %v865, %v866
    %v868 = vmax.f32 %v796, %v797
    %v869 = vrot.slane %v868, 4
    %v870 = vmax.f32 %v868, %v869
    %v871 = vrot.slane %v870, 2
    %v872 = vmax.f32 %v870, %v871
    %v873 = vrot.slane %v872, 1
    %v874 = vmax.f32 %v872, %v873
    %v875 = vmax.f32 %v798, %v799
    %v876 = vrot.slane %v875, 4
    %v877 = vmax.f32 %v875, %v876
    %v878 = vrot.slane %v877, 2
    %v879 = vmax.f32 %v877, %v878
    %v880 = vrot.slane %v879, 1
    %v881 = vmax.f32 %v879, %v880
    %v882 = vmax.f32 %v800, %v801
    %v883 = vrot.slane %v882, 4
    %v884 = vmax.f32 %v882, %v883
    %v885 = vrot.slane %v884, 2
    %v886 = vmax.f32 %v884, %v885
    %v887 = vrot.slane %v886, 1
    %v888 = vmax.f32 %v886, %v887
    %v889 = vmax.f32 %v802, %v803
    %v890 = vrot.slane %v889, 4
    %v891 = vmax.f32 %v889, %v890
    %v892 = vrot.slane %v891, 2
    %v893 = vmax.f32 %v891, %v892
    %v894 = vrot.slane %v893, 1
    %v895 = vmax.f32 %v893, %v894
    %v896 = vmax.f32 %v804, %v805
    %v897 = vrot.slane %v896, 4
    %v898 = vmax.f32 %v896, %v897
    %v899 = vrot.slane %v898, 2
    %v900 = vmax.f32 %v898, %v899
    %v901 = vrot.slane %v900, 1
    %v902 = vmax.f32 %v900, %v901
    %v903 = vmax.f32 %v806, %v807
    %v904 = vrot.slane %v903, 4
    %v905 = vmax.f32 %v903, %v904
    %v906 = vrot.slane %v905, 2
    %v907 = vmax.f32 %v905, %v906
    %v908 = vrot.slane %v907, 1
    %v909 = vmax.f32 %v907, %v908
    %v910 = vmax.f32 %v808, %v809
    %v911 = vrot.slane %v910, 4
    %v912 = vmax.f32 %v910, %v911
    %v913 = vrot.slane %v912, 2
    %v914 = vmax.f32 %v912, %v913
    %v915 = vrot.slane %v914, 1
    %v916 = vmax.f32 %v914, %v915
    %v917 = vmax.f32 %v810, %v811
    %v918 = vrot.slane %v917, 4
    %v919 = vmax.f32 %v917, %v918
    %v920 = vrot.slane %v919, 2
    %v921 = vmax.f32 %v919, %v920
    %v922 = vrot.slane %v921, 1
    %v923 = vmax.f32 %v921, %v922
    %v940 = vsel %vm753, %v825, %v818
    %v941 = vsel %vm755, %v832, %v940
    %v942 = vsel %vm757, %v839, %v941
    %v943 = vsel %vm759, %v846, %v942
    %v944 = vsel %vm761, %v853, %v943
    %v945 = vsel %vm763, %v860, %v944
    %v946 = vsel %vm765, %v867, %v945
    %v947 = vsel %vm753, %v881, %v874
    %v948 = vsel %vm755, %v888, %v947
    %v949 = vsel %vm757, %v895, %v948
    %v950 = vsel %vm759, %v902, %v949
    %v951 = vsel %vm761, %v909, %v950
    %v952 = vsel %vm763, %v916, %v951
    %v953 = vsel %vm765, %v923, %v952
    %v956 = vmax.f32 %v150, %v946
    %v957 = vmax.f32 %v151, %v953
    %958 = vst [vmem:[#allocation2] sm:$0xff] %v150
    %959 = vst [vmem:[#allocation2 + $0x18] sm:$0xff] %v151
    %960 = vst [vmem:[#allocation2 + $0x8] sm:$0xff] %v778
    %961 = vst [vmem:[#allocation2 + $0x20] sm:$0xff] %v779
    %962 = vst [vmem:[#allocation2 + $0x10] sm:$0xff] %v956
    %963 = vst [vmem:[#allocation2 + $0x28] sm:$0xff] %v957
    %964 = vst [vmem:[#allocation4] sm:$0xff] %v401
    %965 = vst [vmem:[#allocation4 + $0x18] sm:$0xff] %v402
    %966 = vst [vmem:[#allocation4 + $0x30] sm:$0xff] %v403
    %967 = vst [vmem:[#allocation4 + $0x48] sm:$0xff] %v404
    %968 = vst [vmem:[#allocation4 + $0x60] sm:$0xff] %v405
    %969 = vst [vmem:[#allocation4 + $0x78] sm:$0xff] %v406
    %970 = vst [vmem:[#allocation4 + $0x90] sm:$0xff] %v407
    %971 = vst [vmem:[#allocation4 + $0xa8] sm:$0xff] %v408
    %972 = vst [vmem:[#allocation4 + $0xc0] sm:$0xff] %v409
    %973 = vst [vmem:[#allocation4 + $0xd8] sm:$0xff] %v410
    %974 = vst [vmem:[#allocation4 + $0xf0] sm:$0xff] %v411
    %975 = vst [vmem:[#allocation4 + $0x108] sm:$0xff] %v412
    %976 = vst [vmem:[#allocation4 + $0x120] sm:$0xff] %v413
    %977 = vst [vmem:[#allocation4 + $0x138] sm:$0xff] %v414
    %978 = vst [vmem:[#allocation4 + $0x150] sm:$0xff] %v415
    %979 = vst [vmem:[#allocation4 + $0x168] sm:$0xff] %v416
    %980 = vst [vmem:[#allocation4 + $0x180] sm:$0xff] %v417
    %981 = vst [vmem:[#allocation4 + $0x198] sm:$0xff] %v418
    %982 = vst [vmem:[#allocation4 + $0x1b0] sm:$0xff] %v419
    %983 = vst [vmem:[#allocation4 + $0x1c8] sm:$0xff] %v420
    %984 = vst [vmem:[#allocation4 + $0x1e0] sm:$0xff] %v421
    %985 = vst [vmem:[#allocation4 + $0x1f8] sm:$0xff] %v422
    %986 = vst [vmem:[#allocation4 + $0x210] sm:$0xff] %v423
    %987 = vst [vmem:[#allocation4 + $0x228] sm:$0xff] %v424
    %988 = vst [vmem:[#allocation4 + $0x240] sm:$0xff] %v425
    %989 = vst [vmem:[#allocation4 + $0x258] sm:$0xff] %v426
    %990 = vst [vmem:[#allocation4 + $0x270] sm:$0xff] %v427
    %991 = vst [vmem:[#allocation4 + $0x288] sm:$0xff] %v428
    %992 = vst [vmem:[#allocation4 + $0x2a0] sm:$0xff] %v429
    %993 = vst [vmem:[#allocation4 + $0x2b8] sm:$0xff] %v430
    %994 = vst [vmem:[#allocation4 + $0x2d0] sm:$0xff] %v431
    %995 = vst [vmem:[#allocation4 + $0x2e8] sm:$0xff] %v432
    %v998 = vrot.slane %v778, 1
    %v999 = vrot.slane %v778, 2
    %v1000 = vrot.slane %v778, 3
    %v1001 = vrot.slane %v778, 4
    %v1002 = vrot.slane %v778, 5
    %v1003 = vrot.slane %v778, 6
    %v1004 = vrot.slane %v778, 7
    %v1005 = vrot.slane %v779, 1
    %v1006 = vrot.slane %v779, 2
    %v1007 = vrot.slane %v779, 3
    %v1008 = vrot.slane %v779, 4
    %v1009 = vrot.slane %v779, 5
    %v1010 = vrot.slane %v779, 6
    %v1011 = vrot.slane %v779, 7
    %v1012 = vperm.slane %v778, 0
    %v1013 = vperm.slane %v998, 0
    %v1014 = vperm.slane %v999, 0
    %v1015 = vperm.slane %v1000, 0
    %v1016 = vperm.slane %v1001, 0
    %v1017 = vperm.slane %v1002, 0
    %v1018 = vperm.slane %v1003, 0
    %v1019 = vperm.slane %v1004, 0
    %v1020 = vperm.slane %v779, 0
    %v1021 = vperm.slane %v1005, 0
    %v1022 = vperm.slane %v1006, 0
    %v1023 = vperm.slane %v1007, 0
    %v1024 = vperm.slane %v1008, 0
    %v1025 = vperm.slane %v1009, 0
    %v1026 = vperm.slane %v1010, 0
    %v1027 = vperm.slane %v1011, 0
    %1044 = vst [vmem:[#allocation4 + $0x8] sm:$0xff] %v1012
    %1045 = vst [vmem:[#allocation4 + $0x20] sm:$0xff] %v1012
    %1046 = vst [vmem:[#allocation4 + $0x38] sm:$0xff] %v1013
    %1047 = vst [vmem:[#allocation4 + $0x50] sm:$0xff] %v1013
    %1048 = vst [vmem:[#allocation4 + $0x68] sm:$0xff] %v1014
    %1049 = vst [vmem:[#allocation4 + $0x80] sm:$0xff] %v1014
    %1050 = vst [vmem:[#allocation4 + $0x98] sm:$0xff] %v1015
    %1051 = vst [vmem:[#allocation4 + $0xb0] sm:$0xff] %v1015
    %1052 = vst [vmem:[#allocation4 + $0xc8] sm:$0xff] %v1016
    %1053 = vst [vmem:[#allocation4 + $0xe0] sm:$0xff] %v1016
    %1054 = vst [vmem:[#allocation4 + $0xf8] sm:$0xff] %v1017
    %1055 = vst [vmem:[#allocation4 + $0x110] sm:$0xff] %v1017
    %1056 = vst [vmem:[#allocation4 + $0x128] sm:$0xff] %v1018
    %1057 = vst [vmem:[#allocation4 + $0x140] sm:$0xff] %v1018
    %1058 = vst [vmem:[#allocation4 + $0x158] sm:$0xff] %v1019
    %1059 = vst [vmem:[#allocation4 + $0x170] sm:$0xff] %v1019
    %1060 = vst [vmem:[#allocation4 + $0x188] sm:$0xff] %v1020
    %1061 = vst [vmem:[#allocation4 + $0x1a0] sm:$0xff] %v1020
    %1062 = vst [vmem:[#allocation4 + $0x1b8] sm:$0xff] %v1021
    %1063 = vst [vmem:[#allocation4 + $0x1d0] sm:$0xff] %v1021
    %1064 = vst [vmem:[#allocation4 + $0x1e8] sm:$0xff] %v1022
    %1065 = vst [vmem:[#allocation4 + $0x200] sm:$0xff] %v1022
    %1066 = vst [vmem:[#allocation4 + $0x218] sm:$0xff] %v1023
    %1067 = vst [vmem:[#allocation4 + $0x230] sm:$0xff] %v1023
    %1068 = vst [vmem:[#allocation4 + $0x248] sm:$0xff] %v1024
    %1069 = vst [vmem:[#allocation4 + $0x260] sm:$0xff] %v1024
    %1070 = vst [vmem:[#allocation4 + $0x278] sm:$0xff] %v1025
    %1071 = vst [vmem:[#allocation4 + $0x290] sm:$0xff] %v1025
    %1072 = vst [vmem:[#allocation4 + $0x2a8] sm:$0xff] %v1026
    %1073 = vst [vmem:[#allocation4 + $0x2c0] sm:$0xff] %v1026
    %1074 = vst [vmem:[#allocation4 + $0x2d8] sm:$0xff] %v1027
    %1075 = vst [vmem:[#allocation4 + $0x2f0] sm:$0xff] %v1027
    %v1078 = vrot.slane %v956, 1
    %v1079 = vrot.slane %v956, 2
    %v1080 = vrot.slane %v956, 3
    %v1081 = vrot.slane %v956, 4
    %v1082 = vrot.slane %v956, 5
    %v1083 = vrot.slane %v956, 6
    %v1084 = vrot.slane %v956, 7
    %v1085 = vrot.slane %v957, 1
    %v1086 = vrot.slane %v957, 2
    %v1087 = vrot.slane %v957, 3
    %v1088 = vrot.slane %v957, 4
    %v1089 = vrot.slane %v957, 5
    %v1090 = vrot.slane %v957, 6
    %v1091 = vrot.slane %v957, 7
    %v1092 = vperm.slane %v956, 0
    %v1093 = vperm.slane %v1078, 0
    %v1094 = vperm.slane %v1079, 0
    %v1095 = vperm.slane %v1080, 0
    %v1096 = vperm.slane %v1081, 0
    %v1097 = vperm.slane %v1082, 0
    %v1098 = vperm.slane %v1083, 0
    %v1099 = vperm.slane %v1084, 0
    %v1100 = vperm.slane %v957, 0
    %v1101 = vperm.slane %v1085, 0
    %v1102 = vperm.slane %v1086, 0
    %v1103 = vperm.slane %v1087, 0
    %v1104 = vperm.slane %v1088, 0
    %v1105 = vperm.slane %v1089, 0
    %v1106 = vperm.slane %v1090, 0
    %v1107 = vperm.slane %v1091, 0
    %1124 = vst [vmem:[#allocation4 + $0x10] sm:$0xff] %v1092
    %1125 = vst [vmem:[#allocation4 + $0x28] sm:$0xff] %v1092
    %1126 = vst [vmem:[#allocation4 + $0x40] sm:$0xff] %v1093
    %1127 = vst [vmem:[#allocation4 + $0x58] sm:$0xff] %v1093
    %1128 = vst [vmem:[#allocation4 + $0x70] sm:$0xff] %v1094
    %1129 = vst [vmem:[#allocation4 + $0x88] sm:$0xff] %v1094
    %1130 = vst [vmem:[#allocation4 + $0xa0] sm:$0xff] %v1095
    %1131 = vst [vmem:[#allocation4 + $0xb8] sm:$0xff] %v1095
    %1132 = vst [vmem:[#allocation4 + $0xd0] sm:$0xff] %v1096
    %1133 = vst [vmem:[#allocation4 + $0xe8] sm:$0xff] %v1096
    %1134 = vst [vmem:[#allocation4 + $0x100] sm:$0xff] %v1097
    %1135 = vst [vmem:[#allocation4 + $0x118] sm:$0xff] %v1097
    %1136 = vst [vmem:[#allocation4 + $0x130] sm:$0xff] %v1098
    %1137 = vst [vmem:[#allocation4 + $0x148] sm:$0xff] %v1098
    %1138 = vst [vmem:[#allocation4 + $0x160] sm:$0xff] %v1099
    %1139 = vst [vmem:[#allocation4 + $0x178] sm:$0xff] %v1099
    %1140 = vst [vmem:[#allocation4 + $0x190] sm:$0xff] %v1100
    %1141 = vst [vmem:[#allocation4 + $0x1a8] sm:$0xff] %v1100
    %1142 = vst [vmem:[#allocation4 + $0x1c0] sm:$0xff] %v1101
    %1143 = vst [vmem:[#allocation4 + $0x1d8] sm:$0xff] %v1101
    %1144 = vst [vmem:[#allocation4 + $0x1f0] sm:$0xff] %v1102
    %1145 = vst [vmem:[#allocation4 + $0x208] sm:$0xff] %v1102
    %1146 = vst [vmem:[#allocation4 + $0x220] sm:$0xff] %v1103
    %1147 = vst [vmem:[#allocation4 + $0x238] sm:$0xff] %v1103
    %1148 = vst [vmem:[#allocation4 + $0x250] sm:$0xff] %v1104
    %1149 = vst [vmem:[#allocation4 + $0x268] sm:$0xff] %v1104
    %1150 = vst [vmem:[#allocation4 + $0x280] sm:$0xff] %v1105
    %1151 = vst [vmem:[#allocation4 + $0x298] sm:$0xff] %v1105
    %1152 = vst [vmem:[#allocation4 + $0x2b0] sm:$0xff] %v1106
    %1153 = vst [vmem:[#allocation4 + $0x2c8] sm:$0xff] %v1106
    %1154 = vst [vmem:[#allocation4 + $0x2e0] sm:$0xff] %v1107
    %1155 = vst [vmem:[#allocation4 + $0x2f8] sm:$0xff] %v1107
    // Predicated region
    $region22: #{tpu_custom_call.1} parent=1 // pred_check
      _
    $region23: #{tpu_custom_call.1} parent=1 // pred_check_branch
      %1157 = sbr.rel (0) target = $region25
    $region24: #{tpu_custom_call.1} parent=1 // pred_region
      %1159 = vsyncadd [#allocation3], 0
      %s1160 = sshll.u32 [#allocation2], 4
      %s1161 = int_to_ptr.vmem [resolvable:$true] %s1160
      %s1162 = sshll.u32 %s5, 4
      %s1163 = int_to_ptr.hbm [resolvable:$true] %s1162
      %1168 = dma.vmem_to_hbm [thread:$0]  %s1161, 768, %s1163, [#allocation3], 384, 384, 24
    $region25: #{tpu_custom_call.1} parent=1 // pred_fallthru
      _
    // Predicated region
    $region26: #{tpu_custom_call.1} parent=1 // pred_check
      _
    $region27: #{tpu_custom_call.1} parent=1 // pred_check_branch
      %1170 = sbr.rel (0) target = $region29
    $region28: #{tpu_custom_call.1} parent=1 // pred_region
      %1172 = vsyncadd [#allocation5], 0
      %s1173 = sshll.u32 [#allocation4], 4
      %s1174 = int_to_ptr.vmem [resolvable:$true] %s1173
      %s1175 = sshll.u32 %s6, 4
      %s1176 = int_to_ptr.hbm [resolvable:$true] %s1175
      %1181 = dma.vmem_to_hbm [thread:$0]  %s1174, 12288, %s1176, [#allocation5], 384, 384, 24
    $region29: #{tpu_custom_call.1} parent=1 // pred_fallthru
      _
    // Predicated region
    $region30: #{tpu_custom_call.1} parent=1 // pred_check
      _
    $region31: #{tpu_custom_call.1} parent=1 // pred_check_branch
      %1183 = sbr.rel (0) target = $region33
    $region32: #{tpu_custom_call.1} parent=1 // pred_region
      %1185 = dma.done [#allocation3], 768
    $region33: #{tpu_custom_call.1} parent=1 // pred_fallthru
      _
    // Predicated region
    $region34: #{tpu_custom_call.1} parent=1 // pred_check
      _
    $region35: #{tpu_custom_call.1} parent=1 // pred_check_branch
      %1187 = sbr.rel (0) target = $region37
    $region36: #{tpu_custom_call.1} parent=1 // pred_region
      %1189 = dma.done [#allocation5], 12288
    $region37: #{tpu_custom_call.1} parent=1 // pred_fallthru
      _
    %1190 = vsyncpa [#allocation3], 1
    %1191 = vsyncpa [#allocation5], 1

</llo_original>
